<compile_context>
chip_gen: v7x
topology: tpu7x:2x2x1
jax: 0.10.0
libtpu: 0.0.40
codegen_flags: <defaults>
</compile_context>

<pallas_src>
import functools

import jax
import jax.numpy as jnp
from jax import lax
from jax.experimental import pallas as pl
from jax.experimental.pallas import tpu as pltpu


def _ce_sum_kernel(hw, x_ref, t_ref, out_ref):
    """Per-block cross-entropy(sum) partial accumulation.

    x_ref:   (C, TL)  logits tile: classes on sublanes, pixels on lanes
    t_ref:   (1, TL)  narrow-int target class index per pixel
    out_ref: (1, TL)  f32 per-lane partial-loss accumulator, resident across the
                      pixel-tile (last, 'arbitrary') grid axis
    """
    p = pl.program_id(1)          # pixel-split (megacore) index
    j = pl.program_id(2)          # pixel-tile index within this split
    C, TL = x_ref.shape

    @pl.when(j == 0)
    def _():
        out_ref[...] = jnp.zeros_like(out_ref)

    x = x_ref[...].astype(jnp.float32)            # (C, TL) f32 compute
    t = t_ref[...].astype(jnp.int32)              # (1, TL)

    # numerically-stable logsumexp over the class (sublane) axis
    m = jnp.max(x, axis=0, keepdims=True)                               # (1, TL)
    lse = m + jnp.log(jnp.sum(jnp.exp(x - m), axis=0, keepdims=True))   # (1, TL)

    # target-class logit: one-hot select, mask built from a tiny (C, 1) iota
    cls = lax.broadcasted_iota(jnp.int32, (C, 1), 0)                    # (C, 1)
    tgt_logit = jnp.sum(jnp.where(cls == t, x, 0.0), axis=0, keepdims=True)

    # mask lanes past the end of the image (ragged last tile / clamped OOB tile)
    # and ignored / out-of-range targets (PyTorch default ignore_index=-100).
    # NB: all math above is strictly per-lane, so garbage in masked lanes can
    # never contaminate valid lanes.
    j_global = p * pl.num_programs(2) + j
    pix = j_global * TL + lax.broadcasted_iota(jnp.int32, (1, TL), 1)
    valid = jnp.logical_and(pix < hw, jnp.logical_and(t >= 0, t < C))

    out_ref[...] += jnp.where(valid, lse - tgt_logit, 0.0)


def _pick_tiling_params():
    """Generation-aware (f32-equivalent block bytes, vmem_limit_bytes)."""
    mib = 1024 * 1024
    try:
        vmem_phys = int(getattr(pltpu.get_tpu_info(), "vmem_capacity_bytes", 0))
    except Exception:
        vmem_phys = 0
    if vmem_phys <= 0:
        return 2 * mib, None               # unknown chip: stay inside scoped default
    if vmem_phys <= 80 * mib:              # v7x: 64 MiB physical per TensorCore
        return 6 * mib, 48 * mib
    return 8 * mib, 96 * mib               # v5e / v6e: 128 MiB physical


def cross_entropy_loss(inputs, targets, *, block_bytes=None):
    """Equivalent of nn.CrossEntropyLoss(weight=None, size_average=False) ('sum').

    inputs : [N, C, H, W] logits (NCHW, like PyTorch); f32 or bf16
    targets: [N, H, W]    int class indices; values outside [0, C) contribute 0
    returns: scalar float32 (sum of per-pixel NLL)
    """
    N, C, H, W = inputs.shape
    HW = H * W

    if block_bytes is None:
        block_bytes, vmem_limit = _pick_tiling_params()
    else:
        vmem_limit = None

    # free reshape: class axis stays second (sublanes), pixels become lanes
    x = inputs.reshape(N, C, HW)

    # shrink the target HBM stream when C is small; upcast to int32 in-kernel
    if C <= 127:
        t_dtype = jnp.int8
    elif C <= 32767:
        t_dtype = jnp.int16
    else:
        t_dtype = jnp.int32
    t = targets.reshape(N, 1, HW).astype(t_dtype)

    # lane tile sized by the f32 compute footprint (~ C * tl * 4 bytes)
    tl = (block_bytes // max(1, C * 4)) // 128 * 128
    tl = max(128, tl)
    if tl >= HW:
        tl = HW                 # single full-extent block (full-dim exemption)
    num_j = pl.cdiv(HW, tl)     # NO padding: ragged last block is masked in-kernel

    # megacore (v7x): split pixel tiles with an outer 'parallel' factor when the
    # batch axis alone cannot occupy both TensorCores. Harmless on 1-TC chips.
    P = 2 if (N % 2 == 1 and num_j >= 2) else 1
    inner = pl.cdiv(num_j, P)

    def pix_tile(p, j):
        # clamp: the (P*inner - num_j) trailing tiles are fully masked in-kernel,
        # so re-read the last real tile instead of issuing an OOB block index.
        return jnp.minimum(p * inner + j, num_j - 1)

    itemsize = jnp.dtype(x.dtype).itemsize
    cost = pl.CostEstimate(
        flops=int(6 * N * C * HW),
        transcendentals=int(N * C * HW + N * HW),
        bytes_accessed=int(N * C * HW * itemsize
                           + N * HW * jnp.dtype(t_dtype).itemsize
                           + N * P * tl * 4),
    )

    cp_kwargs = dict(dimension_semantics=("parallel", "parallel", "arbitrary"))
    if vmem_limit is not None:
        cp_kwargs["vmem_limit_bytes"] = int(vmem_limit)

    partials = pl.pallas_call(
        functools.partial(_ce_sum_kernel, HW),
        out_shape=jax.ShapeDtypeStruct((N, P, 1, tl), jnp.float32),
        grid_spec=pltpu.PrefetchScalarGridSpec(
            num_scalar_prefetch=0,
            grid=(N, P, inner),
            in_specs=[
                pl.BlockSpec((None, C, tl), lambda n, p, j: (n, 0, pix_tile(p, j))),
                pl.BlockSpec((None, 1, tl), lambda n, p, j: (n, 0, pix_tile(p, j))),
            ],
            out_specs=pl.BlockSpec((None, None, 1, tl),
                                   lambda n, p, j: (n, p, 0, 0)),
        ),
        compiler_params=pltpu.CompilerParams(**cp_kwargs),
        cost_estimate=cost,
    )(x, t)

    # single tiny cross-lane reduce of the (N, P, 1, tl) per-lane partial sums
    return jnp.sum(partials)


def _reference(inputs, targets):
    # pure-JAX reference: sum-reduced cross entropy over NCHW logits, with
    # targets outside [0, C) ignored (PyTorch ignore_index behaviour).
    C = inputs.shape[1]
    logp = jax.nn.log_softmax(inputs.astype(jnp.float32), axis=1)      # [N,C,H,W]
    tc = jnp.clip(targets, 0, C - 1).astype(jnp.int32)
    nll = -jnp.take_along_axis(logp, tc[:, None], axis=1)[:, 0]        # [N,H,W]
    valid = (targets >= 0) & (targets < C)
    return jnp.sum(jnp.where(valid, nll, 0.0))


if __name__ == "__main__":
    key = jax.random.PRNGKey(0)
    k1, k2, k3, k4 = jax.random.split(key, 4)

    # Test 1: the module's nominal small shapes, f32, default (auto) tiling.
    N, C, H, W = 2, 4, 16, 16
    inputs = jax.random.normal(k1, (N, C, H, W), dtype=jnp.float32)
    targets = jax.random.randint(k2, (N, H, W), 0, C, dtype=jnp.int32)

    loss = cross_entropy_loss(inputs, targets)
    jax.block_until_ready(loss)
    ref = _reference(inputs, targets)
    assert jnp.allclose(loss, ref, rtol=1e-5, atol=1e-3), (loss, ref)

    # Test 2: bf16 logits, odd C, ragged last tile (HW=289), ignore_index=-100,
    # forced multi-tile grid (tiny block_bytes) exercising the pixel-split path.
    N2, C2, H2, W2 = 1, 5, 17, 17
    inputs2 = jax.random.normal(k3, (N2, C2, H2, W2), dtype=jnp.bfloat16)
    targets2 = jax.random.randint(k4, (N2, H2, W2), 0, C2, dtype=jnp.int32)
    targets2 = targets2.at[0, 0, 0].set(-100)   # PyTorch default ignore_index

    loss2 = cross_entropy_loss(inputs2, targets2, block_bytes=2048)
    jax.block_until_ready(loss2)
    ref2 = _reference(inputs2, targets2)
    assert jnp.allclose(loss2, ref2, rtol=1e-4, atol=1e-2), (loss2, ref2)

    print("KERNEL_OK")
</pallas_src>

<mosaic_0001>
module attributes {stable_mosaic.version = 11 : i64} {
  func.func @_ce_sum_kernel(%arg0: i32, %arg1: i32, %arg2: i32, %arg3: memref<1x4x256xf32, #tpu.memory_space<vmem>>, %arg4: memref<1x1x256xi8, #tpu.memory_space<vmem>>, %arg5: memref<1x1x1x256xf32, #tpu.memory_space<vmem>>) attributes {dimension_semantics = [#tpu.dimension_semantics<parallel>, #tpu.dimension_semantics<parallel>, #tpu.dimension_semantics<arbitrary>], iteration_bounds = array<i64: 2, 1, 1>, scalar_prefetch = 0 : i64, scratch_operands = 0 : i64, tpu.core_type = #tpu.core_type<tc>, window_params = [{transform_indices = @transform_0, window_bounds = array<i64: 1, 4, 256>}, {transform_indices = @transform_1, window_bounds = array<i64: 1, 1, 256>}, {transform_indices = @transform_2, window_bounds = array<i64: 1, 1, 1, 256>}]} {
    %c0_i32 = arith.constant 0 : i32
    %0 = arith.cmpi eq, %arg2, %c0_i32 : i32
    %1 = arith.extui %0 : i1 to i32
    %c0_i32_0 = arith.constant 0 : i32
    %2 = arith.cmpi ne, %1, %c0_i32_0 : i32
    scf.if %2 {
      %cst_20 = arith.constant 0.000000e+00 : f32
      %48 = vector.broadcast %cst_20 : f32 to vector<1x256xf32>
      %c0_21 = arith.constant 0 : index
      %c0_22 = arith.constant 0 : index
      %c0_23 = arith.constant 0 : index
      %c0_24 = arith.constant 0 : index
      %49 = vector.load %arg5[%c0_21, %c0_22, %c0_23, %c0_24] : memref<1x1x1x256xf32, #tpu.memory_space<vmem>>, vector<1x1x1x256xf32>
      %50 = vector.shape_cast %49 : vector<1x1x1x256xf32> to vector<1x256xf32>
      %51 = vector.shape_cast %48 : vector<1x256xf32> to vector<1x1x1x256xf32>
      tpu.vector_store %arg5[%c0_21, %c0_22, %c0_23, %c0_24], %51 {strides = array<i32>} : memref<1x1x1x256xf32, #tpu.memory_space<vmem>>, vector<1x1x1x256xf32>,
    } else {
    }
    %c0 = arith.constant 0 : index
    %c0_1 = arith.constant 0 : index
    %c0_2 = arith.constant 0 : index
    %3 = vector.load %arg3[%c0, %c0_1, %c0_2] : memref<1x4x256xf32, #tpu.memory_space<vmem>>, vector<1x4x256xf32>
    %4 = vector.shape_cast %3 : vector<1x4x256xf32> to vector<4x256xf32>
    %c0_3 = arith.constant 0 : index
    %c0_4 = arith.constant 0 : index
    %c0_5 = arith.constant 0 : index
    %5 = vector.load %arg4[%c0_3, %c0_4, %c0_5] : memref<1x1x256xi8, #tpu.memory_space<vmem>>, vector<1x1x256xi8>
    %6 = vector.shape_cast %5 : vector<1x1x256xi8> to vector<1x256xi8>
    %7 = arith.extsi %6 : vector<1x256xi8> to vector<1x256xi32>
    %cst = arith.constant dense<0xFF800000> : vector<256xf32>
    %8 = vector.multi_reduction <maximumf>, %4, %cst [0] : vector<4x256xf32> to vector<256xf32>
    %9 = vector.shape_cast %8 : vector<256xf32> to vector<1x256xf32>
    %10 = vector.broadcast %9 : vector<1x256xf32> to vector<4x256xf32>
    %11 = arith.subf %4, %10 : vector<4x256xf32>
    %12 = math.exp %11 : vector<4x256xf32>
    %cst_6 = arith.constant dense<0.000000e+00> : vector<256xf32>
    %13 = vector.multi_reduction <add>, %12, %cst_6 [0] : vector<4x256xf32> to vector<256xf32>
    %14 = vector.shape_cast %13 : vector<256xf32> to vector<1x256xf32>
    %15 = math.log %14 : vector<1x256xf32>
    %16 = arith.addf %9, %15 : vector<1x256xf32>
    %17 = tpu.iota {dimensions = array<i32: 0>} : vector<4x1xi32>
    %18 = vector.broadcast %17 : vector<4x1xi32> to vector<4x256xi32>
    %19 = vector.broadcast %7 : vector<1x256xi32> to vector<4x256xi32>
    %20 = arith.cmpi eq, %18, %19 : vector<4x256xi32>
    %cst_7 = arith.constant 0.000000e+00 : f32
    %21 = vector.broadcast %cst_7 : f32 to vector<4x256xf32>
    %22 = arith.select %20, %4, %21 : vector<4x256xi1>, vector<4x256xf32>
    %cst_8 = arith.constant dense<0.000000e+00> : vector<256xf32>
    %23 = vector.multi_reduction <add>, %22, %cst_8 [0] : vector<4x256xf32> to vector<256xf32>
    %24 = vector.shape_cast %23 : vector<256xf32> to vector<1x256xf32>
    %c1_i32 = arith.constant 1 : i32
    %25 = arith.muli %arg1, %c1_i32 : i32
    %26 = arith.addi %25, %arg2 : i32
    %c256_i32 = arith.constant 256 : i32
    %27 = arith.muli %26, %c256_i32 : i32
    %28 = tpu.iota {dimensions = array<i32: 1>} : vector<1x256xi32>
    %29 = vector.broadcast %27 : i32 to vector<1x256xi32>
    %30 = arith.addi %29, %28 : vector<1x256xi32>
    %c256_i32_9 = arith.constant 256 : i32
    %31 = vector.broadcast %c256_i32_9 : i32 to vector<1x256xi32>
    %32 = arith.cmpi slt, %30, %31 : vector<1x256xi32>
    %c0_i32_10 = arith.constant 0 : i32
    %33 = vector.broadcast %c0_i32_10 : i32 to vector<1x256xi32>
    %34 = arith.cmpi sge, %7, %33 : vector<1x256xi32>
    %c4_i32 = arith.constant 4 : i32
    %35 = vector.broadcast %c4_i32 : i32 to vector<1x256xi32>
    %36 = arith.cmpi slt, %7, %35 : vector<1x256xi32>
    %37 = arith.andi %34, %36 : vector<1x256xi1>
    %38 = arith.andi %32, %37 : vector<1x256xi1>
    %c0_11 = arith.constant 0 : index
    %c0_12 = arith.constant 0 : index
    %c0_13 = arith.constant 0 : index
    %c0_14 = arith.constant 0 : index
    %39 = vector.load %arg5[%c0_11, %c0_12, %c0_13, %c0_14] : memref<1x1x1x256xf32, #tpu.memory_space<vmem>>, vector<1x1x1x256xf32>
    %40 = vector.shape_cast %39 : vector<1x1x1x256xf32> to vector<1x256xf32>
    %41 = arith.subf %16, %24 : vector<1x256xf32>
    %cst_15 = arith.constant 0.000000e+00 : f32
    %42 = vector.broadcast %cst_15 : f32 to vector<1x256xf32>
    %43 = arith.select %38, %41, %42 : vector<1x256xi1>, vector<1x256xf32>
    %44 = arith.addf %40, %43 : vector<1x256xf32>
    %c0_16 = arith.constant 0 : index
    %c0_17 = arith.constant 0 : index
    %c0_18 = arith.constant 0 : index
    %c0_19 = arith.constant 0 : index
    %45 = vector.load %arg5[%c0_16, %c0_17, %c0_18, %c0_19] : memref<1x1x1x256xf32, #tpu.memory_space<vmem>>, vector<1x1x1x256xf32>
    %46 = vector.shape_cast %45 : vector<1x1x1x256xf32> to vector<1x256xf32>
    %47 = vector.shape_cast %44 : vector<1x256xf32> to vector<1x1x1x256xf32>
    tpu.vector_store %arg5[%c0_16, %c0_17, %c0_18, %c0_19], %47 {strides = array<i32>} : memref<1x1x1x256xf32, #tpu.memory_space<vmem>>, vector<1x1x1x256xf32>,
    return
  }
  func.func @transform_0(%arg0: i32, %arg1: i32, %arg2: i32) -> (i32, i32, i32) {
    %c1_i32 = arith.constant 1 : i32
    %0 = arith.muli %arg1, %c1_i32 : i32
    %1 = arith.addi %0, %arg2 : i32
    %c0_i32 = arith.constant 0 : i32
    %2 = arith.minsi %1, %c0_i32 : i32
    %c0_i32_0 = arith.constant 0 : i32
    %c0_i32_1 = arith.constant 0 : i32
    return %arg0, %c0_i32_0, %2 : i32, i32, i32
  }
  func.func @transform_1(%arg0: i32, %arg1: i32, %arg2: i32) -> (i32, i32, i32) {
    %c1_i32 = arith.constant 1 : i32
    %0 = arith.muli %arg1, %c1_i32 : i32
    %1 = arith.addi %0, %arg2 : i32
    %c0_i32 = arith.constant 0 : i32
    %2 = arith.minsi %1, %c0_i32 : i32
    %c0_i32_0 = arith.constant 0 : i32
    %c0_i32_1 = arith.constant 0 : i32
    return %arg0, %c0_i32_0, %2 : i32, i32, i32
  }
  func.func @transform_2(%arg0: i32, %arg1: i32, %arg2: i32) -> (i32, i32, i32, i32) {
    %c0_i32 = arith.constant 0 : i32
    %c0_i32_0 = arith.constant 0 : i32
    %c0_i32_1 = arith.constant 0 : i32
    return %arg0, %arg1, %c0_i32, %c0_i32_0 : i32, i32, i32, i32
  }
}

</mosaic_0001>

<llo_original>
// kernel: tpu_custom_call.1
$region0: #{tpu_custom_call.1}
  #allocation0 [shape = 'u32[]', space=smem, size = 0x4, offset = 0x4, fixed_abs, tag = 'smem constant byte address 0x4 - core index']
  #allocation1 [shape = 'u32[144,128]{1,0:T(1,128)}', space=vmem, size = 0x12000, scoped, tag = 'internal scratch']
  %s0 = inlined_call_operand.hbm [shape: f32[2,4,256], index: 0, kind: input, shape index: {}]
  %s1 = inlined_call_operand.vmem [shape: s8[2,1,256], index: 1, kind: input, shape index: {}]
  %s2 = inlined_call_operand.hbm [shape: f32[2,1,1,256], index: 2, kind: output, shape index: {}]
  %s3 = sld [smem:[#allocation0]]
  $region49: #{tpu_custom_call.1} parent=0
    _
  %s5 = ssub.s32 1, %s3
  %s6 = scalar_select 0, %s5, %s3
  $region1: #{tpu_custom_call.1} parent=0
    #allocation2 [shape = 'u8[8192]{0}', space=vmem, size = 0x2000, scoped, tag = 'input window, operand 0']
    #allocation3 [shape = 's32[2]{0}', space=sflag, size = 0x8, scoped, tag = 'scoped memory for tpu_custom_call.1']
    #allocation4 [shape = 's32[2]{0}', space=sflag, size = 0x8, scoped, tag = 'scoped memory for tpu_custom_call.1']
    #allocation5 [shape = 'u8[2048]{0}', space=vmem, size = 0x800, scoped, tag = 'output window, operand 0']
    %7 = vsyncpa [#allocation3], 0
    %s8 = scalar_lea.sflag [#allocation3], 1
    %9 = vsyncpa %s8, 0
    %10 = vsyncpa [#allocation4], 0
    %s11 = scalar_lea.sflag [#allocation4], 1
    %12 = vsyncpa %s11, 0
    loop: start=0, step=1, limit=4
    $region2: #{tpu_custom_call.1} parent=1 // loop_pre_header
      _
    $region3: #{tpu_custom_call.1} parent=1 // loop_header
      %s14 = sphi 0, %s18
      %p15 = scmp.ge.s32.totalorder %s14, 4
      %s21 = sphi 0, %s40
      %s22 = sphi 0, %s36
      %s23 = sphi 0, %s32
      %s24 = sphi 0, %s21
      %s25 = sphi 0, %s22
      %s26 = sphi 0, %s23
      %s27 = sphi 0, %s24
      %s28 = sphi 0, %s25
      %s29 = sphi 0, %s26
      %s51 = sphi 0, %s53
      %s54 = sphi 0, %s51
      %s55 = sphi 0, %s54
      %s71 = sphi 0, %s55
      %s85 = sphi 0, %s87
      %s88 = sphi 0, %s85
      %s89 = sphi 0, %s88
      %s105 = sphi 0, %s89
      %s113 = sphi 0, %s115
      %s116 = sphi 0, %s113
      %s117 = sphi 0, %s116
      %s133 = sphi 0, %s117
    $region4: #{tpu_custom_call.1} parent=1 // loop_header_branch
      %17 = sbr.rel (%p15) target = $region8
    $region5: #{tpu_custom_call.1} parent=1 // loop_body
      %s19 = ssub.s32 %s14, 1
      %s20 = ssub.s32 %s14, 2
      %s30 = sadd.s32 1, %s23
      %p31 = scmp.ge.s32.totalorder %s30, 1
      %s32 = scalar_select %p31, 0, %s30
      %s33 = sadd.s32 1, %s22
      %s34 = scalar_select %p31, %s33, %s22
      %p35 = scmp.ge.s32.totalorder %s34, 1
      %s36 = scalar_select %p35, 0, %s34
      %s37 = sadd.s32 1, %s21
      %s38 = scalar_select %p35, %s37, %s21
      %p39 = scmp.ge.s32.totalorder %s38, 2
      %s40 = scalar_select %p39, 0, %s38
      %s41 = sadd.s32 %s22, %s23
      %p42 = scmp.lt.s32.totalorder %s41, 0
      %s43 = scalar_select %p42, %s41, 0
      %s44 = sadd.s32 %s36, %s32
      %p45 = scmp.lt.s32.totalorder %s44, 0
      %s46 = scalar_select %p45, %s44, 0
      %s47 = ssub.s32 %s21, %s40
      %s48 = ssub.s32 %s43, %s46
      %s49 = sor.u32 %s47, %s48
      %p50 = scmp.eq.s32.totalorder %s49, 0
      %s52 = sadd.s32 %s51, 1
      %s53 = scalar_select %p50, %s51, %s52
      %p56 = pneg %p50
      %p57 = scmp.eq.s32.totalorder %s14, 1
      %p58 = por %p56, %p57
      %p59 = scmp.ne.s32.totalorder %s51, %s54
      %p60 = scmp.eq.s32.totalorder %s14, 0
      %p61 = por %p59, %p60
      %p62 = scmp.ne.s32.totalorder %s51, %s54
      %p63 = scmp.eq.s32.totalorder %s19, 1
      %p64 = por %p62, %p63
      %p65 = scmp.ne.s32.totalorder %s54, %s55
      %p66 = scmp.eq.s32.totalorder %s19, 0
      %p67 = por %p65, %p66
      %p68 = scmp.ne.s32.totalorder %s54, %s55
      %p69 = scmp.eq.s32.totalorder %s20, 1
      %p70 = por %p68, %p69
      %p72 = scmp.ne.s32.totalorder %s55, %s71
      %p73 = scmp.eq.s32.totalorder %s20, 0
      %p74 = por %p72, %p73
      %s75 = sadd.s32 %s22, %s23
      %p76 = scmp.lt.s32.totalorder %s75, 0
      %s77 = scalar_select %p76, %s75, 0
      %s78 = sadd.s32 %s36, %s32
      %p79 = scmp.lt.s32.totalorder %s78, 0
      %s80 = scalar_select %p79, %s78, 0
      %s81 = ssub.s32 %s21, %s40
      %s82 = ssub.s32 %s77, %s80
      %s83 = sor.u32 %s81, %s82
      %p84 = scmp.eq.s32.totalorder %s83, 0
      %s86 = sadd.s32 %s85, 1
      %s87 = scalar_select %p84, %s85, %s86
      %p90 = pneg %p84
      %p91 = scmp.eq.s32.totalorder %s14, 1
      %p92 = por %p90, %p91
      %p93 = scmp.ne.s32.totalorder %s85, %s88
      %p94 = scmp.eq.s32.totalorder %s14, 0
      %p95 = por %p93, %p94
      %p96 = scmp.ne.s32.totalorder %s85, %s88
      %p97 = scmp.eq.s32.totalorder %s19, 1
      %p98 = por %p96, %p97
      %p99 = scmp.ne.s32.totalorder %s88, %s89
      %p100 = scmp.eq.s32.totalorder %s19, 0
      %p101 = por %p99, %p100
      %p102 = scmp.ne.s32.totalorder %s88, %s89
      %p103 = scmp.eq.s32.totalorder %s20, 1
      %p104 = por %p102, %p103
      %p106 = scmp.ne.s32.totalorder %s89, %s105
      %p107 = scmp.eq.s32.totalorder %s20, 0
      %p108 = por %p106, %p107
      %s109 = ssub.s32 %s21, %s40
      %s110 = ssub.s32 %s22, %s36
      %s111 = sor.u32 %s109, %s110
      %p112 = scmp.eq.s32.totalorder %s111, 0
      %s114 = sadd.s32 %s113, 1
      %s115 = scalar_select %p112, %s113, %s114
      %p118 = pneg %p112
      %p119 = scmp.eq.s32.totalorder %s14, 1
      %p120 = por %p118, %p119
      %p121 = scmp.ne.s32.totalorder %s113, %s116
      %p122 = scmp.eq.s32.totalorder %s14, 0
      %p123 = por %p121, %p122
      %p124 = scmp.ne.s32.totalorder %s113, %s116
      %p125 = scmp.eq.s32.totalorder %s19, 1
      %p126 = por %p124, %p125
      %p127 = scmp.ne.s32.totalorder %s116, %s117
      %p128 = scmp.eq.s32.totalorder %s19, 0
      %p129 = por %p127, %p128
      %p130 = scmp.ne.s32.totalorder %s116, %s117
      %p131 = scmp.eq.s32.totalorder %s20, 1
      %p132 = por %p130, %p131
      %p134 = scmp.ne.s32.totalorder %s117, %s133
      %p135 = scmp.eq.s32.totalorder %s20, 0
      %p136 = por %p134, %p135
      %p137 = scmp.le.s32.totalorder 1, %s14
      %p138 = scmp.lt.s32.totalorder %s14, 3
      %p139 = pnand %p137, %p138
      %p140 = pneg %p139
      // Predicated region
      $region9: #{tpu_custom_call.1} parent=5 // pred_check
        _
      $region10: #{tpu_custom_call.1} parent=5 // pred_check_branch
        %142 = sbr.rel (%p139) target = $region12
      $region11: #{tpu_custom_call.1} parent=5 // pred_region
        %s143 = ssub.s32 %s14, 1
      $region12: #{tpu_custom_call.1} parent=5 // pred_fallthru
        _
      %p144 = scmp.lt.s32.totalorder %s14, 2
      // Predicated region
      $region13: #{tpu_custom_call.1} parent=5 // pred_check
        %p145 = pneg %p144
      $region14: #{tpu_custom_call.1} parent=5 // pred_check_branch
        %147 = sbr.rel (%p145) target = $region16
      $region15: #{tpu_custom_call.1} parent=5 // pred_region
        // Predicated region
        $region17: #{tpu_custom_call.1} parent=15 // pred_check
          %p148 = pneg %p61
        $region18: #{tpu_custom_call.1} parent=15 // pred_check_branch
          %150 = sbr.rel (%p148) target = $region20
        $region19: #{tpu_custom_call.1} parent=15 // pred_region
          %s151 = sand.u32 %s51, 1
          %s152 = scalar_lea.sflag [#allocation3], %s151
          %s153 = sand.u32 %s51, 1
          %s154 = smul.addr %s153, 8
          %s155 = scalar_lea.vmem [#allocation2], %s154
          %s156 = sadd.s32 %s22, %s23
          %p157 = scmp.lt.s32.totalorder %s156, 0
          %s158 = scalar_select %p157, %s156, 0
          %s159 = smul.u32 2, %s158
          %s161 = ssub.s32 128, 128
          %162 = vsyncadd %s152, %s161
          %s163 = smul.addr %s21, 2
          %s164 = sadd.s32 %s159, %s163
          %s165 = smul.addr %s164, 64
          %s166 = scalar_lea.hbm %s0, %s165
          %s168 = sshll.u32 %s155, 4
          %s169 = int_to_ptr.vmem [resolvable:$true] %s168
          %171 = dma.hbm_to_vmem [thread:$0]  %s166, 128, %s169, %s152
        $region20: #{tpu_custom_call.1} parent=15 // pred_fallthru
          _
        // Predicated region
        $region21: #{tpu_custom_call.1} parent=15 // pred_check
          %p172 = pneg %p95
        $region22: #{tpu_custom_call.1} parent=15 // pred_check_branch
          %174 = sbr.rel (%p172) target = $region24
        $region23: #{tpu_custom_call.1} parent=15 // pred_region
          %s175 = sadd.s32 %s22, %s23
          %p176 = scmp.lt.s32.totalorder %s175, 0
          %s177 = scalar_select %p176, %s175, 0
          %s178 = smul.u32 2, %s177
          %p179 = scmp.lt.s32.totalorder %s21, 1
          %s180 = scalar_select %p179, %s21, 1
          %p181 = scmp.lt.s32.totalorder %s178, 1
          %s182 = scalar_select %p181, %s178, 1
          %s183 = smul.addr %s180, 2
          %s184 = sadd.s32 %s182, %s183
          %s185 = scalar_lea.vmem %s1, %s184
          %s186 = sadd.s32 %s22, %s23
          %p187 = scmp.lt.s32.totalorder %s186, 0
          %s188 = scalar_select %p187, %s186, 0
          %s189 = smul.u32 2, %s188
        $region24: #{tpu_custom_call.1} parent=15 // pred_fallthru
          _
      $region16: #{tpu_custom_call.1} parent=5 // pred_fallthru
        _
      %p190 = scmp.le.s32.totalorder 1, %s14
      %p191 = scmp.lt.s32.totalorder %s14, 3
      %p192 = pnand %p190, %p191
      %p193 = pneg %p192
      // Predicated region
      $region25: #{tpu_custom_call.1} parent=5 // pred_check
        _
      $region26: #{tpu_custom_call.1} parent=5 // pred_check_branch
        %195 = sbr.rel (%p192) target = $region28
      $region27: #{tpu_custom_call.1} parent=5 // pred_region
        %s196 = ssub.s32 %s14, 1
        %s197 = sand.u32 %s54, 1
        %s198 = scalar_lea.sflag [#allocation3], %s197
        %s199 = sand.u32 %s54, 1
        %s200 = smul.addr %s199, 8
        %s201 = scalar_lea.vmem [#allocation2], %s200
        // Predicated region
        $region29: #{tpu_custom_call.1} parent=27 // pred_check
          %p202 = pneg %p67
        $region30: #{tpu_custom_call.1} parent=27 // pred_check_branch
          %204 = sbr.rel (%p202) target = $region32
        $region31: #{tpu_custom_call.1} parent=27 // pred_region
          %205 = dma.done %s198, 128
        $region32: #{tpu_custom_call.1} parent=27 // pred_fallthru
          _
        %s206 = sand.u32 %s54, 1
        %s207 = scalar_lea.sflag [#allocation3], %s206
        %s208 = sand.u32 %s54, 1
        %s209 = smul.addr %s208, 8
        %s210 = scalar_lea.vmem [#allocation2], %s209
        %p211 = pneg %p67
        %p212 = pneg %p64
        %s213 = sadd.s32 %s25, %s26
        %p214 = scmp.lt.s32.totalorder %s213, 0
        %s215 = scalar_select %p214, %s213, 0
        %s216 = smul.u32 2, %s215
        %p217 = scmp.lt.s32.totalorder %s24, 1
        %s218 = scalar_select %p217, %s24, 1
        %p219 = scmp.lt.s32.totalorder %s216, 1
        %s220 = scalar_select %p219, %s216, 1
        %s221 = smul.addr %s218, 2
        %s222 = sadd.s32 %s220, %s221
        %s223 = scalar_lea.vmem %s1, %s222
        %p224 = pneg %p101
        %p225 = pneg %p98
        %p226 = pneg %p129
        %p227 = pneg %p126
        %s228 = sand.u32 %s116, 1
        %s229 = scalar_lea.sflag [#allocation4], %s228
        %s230 = sand.u32 %s116, 1
        %s231 = smul.addr %s230, 2
        %s232 = scalar_lea.vmem [#allocation5], %s231
        %s233 = sadd.s32 %s25, %s26
        %p234 = scmp.lt.s32.totalorder %s233, 0
        %s235 = scalar_select %p234, %s233, 0
        %s236 = smul.u32 2, %s235
        %s237 = sadd.s32 %s25, %s26
        %p238 = scmp.lt.s32.totalorder %s237, 0
        %s239 = scalar_select %p238, %s237, 0
        %s240 = smul.u32 2, %s239
        %p241 = scmp.lt.s32.totalorder %s24, 1
        %s242 = scalar_select %p241, %s24, 1
        %p243 = scmp.lt.s32.totalorder %s240, 1
        %s244 = scalar_select %p243, %s240, 1
        %s245 = smul.addr %s242, 2
        %s246 = sadd.s32 %s244, %s245
        %s247 = scalar_lea.vmem %s1, %s246
        %s248 = sadd.s32 %s25, %s26
        %p249 = scmp.lt.s32.totalorder %s248, 0
        %s250 = scalar_select %p249, %s248, 0
        %s251 = smul.u32 2, %s250
        %p252 = scmp.eq.s32.totalorder %s26, 0
        // Predicated region
        $region33: #{tpu_custom_call.1} parent=27 // pred_check
          %p253 = pneg %p252
        $region34: #{tpu_custom_call.1} parent=27 // pred_check_branch
          %255 = sbr.rel (%p253) target = $region36
        $region35: #{tpu_custom_call.1} parent=27 // pred_region
          %v256 = vlaneseq
          %vm257 = vcmp.ge.s32.totalorder %v256, 0
          %vm258 = vcmp.lt.s32.totalorder %v256, 256
          %vm259 = vmand %vm257, %vm258
          %260 = vst.msk [vmem:[%s232] sm:$0x3] %vm259, 0.0
        $region36: #{tpu_custom_call.1} parent=27 // pred_fallthru
          _
        %v261 = vld [vmem:[%s201] sm:$0xff]
        %v262 = vld [vmem:[%s247] sm:$0x3]
        %v263 = vunpack.c.0.s8 %v262
        %v265 = vcombine.high %v261, %v261
        %vm267 = vcmask 1043456
        %v268 = vsel %vm267, %v261, -inf
        %v269 = vrot.slane %v268, 4
        %v270 = vmax.f32 %v268, %v269
        %v271 = vrot.slane %v270, 2
        %v272 = vmax.f32 %v270, %v271
        %v273 = vrot.slane %v272, 1
        %v274 = vmax.f32 %v272, %v273
        %v275 = vsel %vm267, %v265, -inf
        %v276 = vrot.slane %v275, 4
        %v277 = vmax.f32 %v275, %v276
        %v278 = vrot.slane %v277, 2
        %v279 = vmax.f32 %v277, %v278
        %v280 = vrot.slane %v279, 1
        %v281 = vmax.f32 %v279, %v280
        %v284 = vcombine.low %v274, %v281
        %v286 = vsub.f32 %v261, %v284
        %v287 = vmul.f32 %v286, 1.442695
        %v288 = vpow.pop %v287
        %v290 = vcombine.high %v288, %v288
        %v292 = vsel %vm267, %v288, 0.0
        %v293 = vrot.slane %v292, 4
        %v294 = vadd.f32 %v292, %v293
        %v295 = vrot.slane %v294, 2
        %v296 = vadd.f32 %v294, %v295
        %v297 = vrot.slane %v296, 1
        %v298 = vadd.f32 %v296, %v297
        %v299 = vsel %vm267, %v290, 0.0
        %v300 = vrot.slane %v299, 4
        %v301 = vadd.f32 %v299, %v300
        %v302 = vrot.slane %v301, 2
        %v303 = vadd.f32 %v301, %v302
        %v304 = vrot.slane %v303, 1
        %v305 = vadd.f32 %v303, %v304
        %v306 = vlog2.pop %v298
        %v307 = vmul.f32 %v306, 0.6931472
        %v308 = vlog2.pop %v305
        %v309 = vmul.f32 %v308, 0.6931472
        %v310 = vadd.f32 %v274, %v307
        %v311 = vadd.f32 %v281, %v309
        %v312 = vlaneseq
        %v313 = vshrl.u32 %v312, 7
        %v314 = vlaneseq
        %v315 = vshrl.u32 %v314, 7
        %v316 = vsub.s32 0, %v315
        %v317 = vrot.slane %v263, %v316
        %v318 = vlaneseq
        %v319 = vshrl.u32 %v318, 7
        %v320 = vsub.s32 4, %v319
        %v321 = vrot.slane %v263, %v320
        %v322 = vlaneseq
        %v323 = vshrl.u32 %v322, 7
        %v324 = vsub.s32 0, %v323
        %v325 = vrot.slane %v317, %v324
        %v326 = vlaneseq
        %v327 = vshrl.u32 %v326, 7
        %v328 = vsub.s32 0, %v327
        %v329 = vrot.slane %v321, %v328
        %vm330 = vcmp.eq.s32.totalorder %v313, %v325
        %vm331 = vcmp.eq.s32.totalorder %v313, %v329
        %v332 = vsel %vm330, %v261, 0.0
        %v333 = vsel %vm331, %v265, 0.0
        %v334 = vsel %vm267, %v332, 0.0
        %v335 = vrot.slane %v334, 4
        %v336 = vadd.f32 %v334, %v335
        %v337 = vrot.slane %v336, 2
        %v338 = vadd.f32 %v336, %v337
        %v339 = vrot.slane %v338, 1
        %v340 = vadd.f32 %v338, %v339
        %v341 = vsel %vm267, %v333, 0.0
        %v342 = vrot.slane %v341, 4
        %v343 = vadd.f32 %v341, %v342
        %v344 = vrot.slane %v343, 2
        %v345 = vadd.f32 %v343, %v344
        %v346 = vrot.slane %v345, 1
        %v347 = vadd.f32 %v345, %v346
        %s348 = sadd.s32 %s25, %s26
        %s349 = smul.u32 %s348, 256
        %v350 = vlaneseq
        %v351 = vand.u32 %v350, 127
        %v352 = vadd.s32 %v351, 128
        %v353 = vstv %s349
        %v354 = vadd.s32 %v353, %v351
        %v355 = vadd.s32 %v353, %v352
        %vm356 = vcmp.lt.s32.totalorder %v354, 256
        %vm357 = vcmp.lt.s32.totalorder %v355, 256
        %vm358 = vcmp.ge.s32.totalorder %v263, 0
        %vm359 = vcmp.lt.s32.totalorder %v263, 4
        %vm360 = vmand %vm358, %vm359
        %v361 = vsel %vm360, 1, 0
        %v362 = vlaneseq
        %v363 = vshrl.u32 %v362, 7
        %v364 = vsub.s32 0, %v363
        %v365 = vrot.slane %v361, %v364
        %v366 = vlaneseq
        %v367 = vshrl.u32 %v366, 7
        %v368 = vsub.s32 4, %v367
        %v369 = vrot.slane %v361, %v368
        %vm370 = vcmp.ne.s32.totalorder %v365, 0
        %vm371 = vcmp.ne.s32.totalorder %v369, 0
        %vm372 = vmand %vm356, %vm370
        %vm373 = vmand %vm357, %vm371
        %v374 = vld [vmem:[%s232] sm:$0x3]
        %v375 = vsub.f32 %v310, %v340
        %v376 = vsub.f32 %v311, %v347
        %v377 = vsel %vm372, %v375, 0.0
        %v378 = vsel %vm373, %v376, 0.0
        %v381 = vcombine.low %v377, %v378
        %v383 = vunpack.c.l.s4 1966171168
        %v384 = vunpack.c.0.s8 %v383
        %v385 = vlaneseq
        %v386 = vshrl.u32 %v385, 7
        %v387 = vsub.s32 %v384, %v386
        %v388 = vrot.slane %v381, %v387
        %v390 = vunpack.c.l.s4 1966171168
        %v391 = vunpack.c.0.s8 %v390
        %v392 = vlaneseq
        %v393 = vshrl.u32 %v392, 7
        %v394 = vsub.s32 %v391, %v393
        %v395 = vrot.slane %v388, %v394
        %v397 = vadd.f32 %v374, %v395
        %v398 = vlaneseq
        %vm399 = vcmp.ge.s32.totalorder %v398, 0
        %vm400 = vcmp.lt.s32.totalorder %v398, 256
        %vm401 = vmand %vm399, %vm400
        %402 = vst.msk [vmem:[%s232] sm:$0x3] %vm401, %v397
        %s403 = sand.u32 %s116, 1
        %s404 = scalar_lea.sflag [#allocation4], %s403
        %s405 = sand.u32 %s116, 1
        %s406 = smul.addr %s405, 2
        %s407 = scalar_lea.vmem [#allocation5], %s406
        // Predicated region
        $region37: #{tpu_custom_call.1} parent=27 // pred_check
          %p408 = pneg %p126
        $region38: #{tpu_custom_call.1} parent=27 // pred_check_branch
          %410 = sbr.rel (%p408) target = $region40
        $region39: #{tpu_custom_call.1} parent=27 // pred_region
          %s412 = ssub.s32 32, 32
          %413 = vsyncadd %s404, %s412
          %s414 = smul.addr %s25, 2
          %s415 = smul.addr %s24, 2
          %s416 = sadd.s32 %s414, %s415
          %s417 = smul.addr %s416, 16
          %s418 = scalar_lea.hbm %s2, %s417
          %s420 = sshll.u32 %s407, 4
          %s421 = int_to_ptr.vmem [resolvable:$true] %s420
          %423 = dma.vmem_to_hbm [thread:$0]  %s421, 32, %s418, %s404
        $region40: #{tpu_custom_call.1} parent=27 // pred_fallthru
          _
      $region28: #{tpu_custom_call.1} parent=5 // pred_fallthru
        _
      %p424 = scmp.le.s32.totalorder 2, %s14
      // Predicated region
      $region41: #{tpu_custom_call.1} parent=5 // pred_check
        %p425 = pneg %p424
      $region42: #{tpu_custom_call.1} parent=5 // pred_check_branch
        %427 = sbr.rel (%p425) target = $region44
      $region43: #{tpu_custom_call.1} parent=5 // pred_region
        %s428 = ssub.s32 %s14, 2
        // Predicated region
        $region45: #{tpu_custom_call.1} parent=43 // pred_check
          %p429 = pneg %p132
        $region46: #{tpu_custom_call.1} parent=43 // pred_check_branch
          %431 = sbr.rel (%p429) target = $region48
        $region47: #{tpu_custom_call.1} parent=43 // pred_region
          %s432 = sand.u32 %s117, 1
          %s433 = scalar_lea.sflag [#allocation4], %s432
          %s434 = sand.u32 %s117, 1
          %s435 = smul.addr %s434, 2
          %s436 = scalar_lea.vmem [#allocation5], %s435
          %437 = dma.done %s433, 32
        $region48: #{tpu_custom_call.1} parent=43 // pred_fallthru
          _
      $region44: #{tpu_custom_call.1} parent=5 // pred_fallthru
        _
    $region6: #{tpu_custom_call.1} parent=1 // loop_footer
      %s18 = sadd.s32 1, %s14
    $region7: #{tpu_custom_call.1} parent=1 // loop_footer_branch
      %13 = sbr.rel target = $region3
    $region8: #{tpu_custom_call.1} parent=1 // loop_exit
      _
    %438 = vsyncpa [#allocation3], 1
    %s439 = scalar_lea.sflag [#allocation3], 1
    %440 = vsyncpa %s439, 1
    %441 = vsyncpa [#allocation4], 1
    %s442 = scalar_lea.sflag [#allocation4], 1
    %443 = vsyncpa %s442, 1

</llo_original>
